<compile_context>
chip_gen: v5e
topology: v5e:2x2
jax: 0.10.0
libtpu: 0.0.40
codegen_flags: <defaults>
</compile_context>

<pallas_src>
import jax
import jax.numpy as jnp
from jax.experimental import pallas as pl
from jax.experimental.pallas import tpu as pltpu

IN_FEATURES = 6
HIDDEN = 4
LANE = 128
SUBLANES = 8


def mlp_kernel(w1_ref, b1_ref, w2_ref, b2_ref, x_ref, out_ref):
    # w1_ref: (4, 6) SMEM   b1_ref: (4,) SMEM
    # w2_ref: (1, 4) SMEM   b2_ref: (1,) SMEM        (torch nn.Linear layout)
    # x_ref : (6, 8, tbl) VMEM -- batch packed over (sublane, lane)
    # out_ref: (8, tbl)    VMEM -- lane-dense, fully packed vregs
    x = x_ref[...]                                   # (6, 8, tbl) f32
    acc = None
    for j in range(HIDDEN):
        # h_j = sigmoid(sum_k w1[j,k] * x_k + b1[j]); bias folded into the
        # first FMA (no separate splat); sigmoid's exp runs on the EUP slot.
        h = x[0] * w1_ref[j, 0] + b1_ref[j]
        for k in range(1, IN_FEATURES):
            h = h + x[k] * w1_ref[j, k]
        h = jax.nn.sigmoid(h)                        # sigmoid(layer 1)
        if acc is None:
            acc = h * w2_ref[0, 0] + b2_ref[0]
        else:
            acc = acc + h * w2_ref[0, j]
    out_ref[...] = jax.nn.sigmoid(acc)               # sigmoid(layer 2)


def _round_up(a, m):
    return ((a + m - 1) // m) * m


def mlp_forward(x, w1, b1, w2, b2, *, max_tile_lanes=16 * 1024):
    """x: (B, 6) f32.  Params in torch layout: w1 (4,6), b1 (4,), w2 (1,4), b2 (1,).
    Returns (B, 1) f32."""
    B = x.shape[0]

    # ---- Tile selection -------------------------------------------------
    # Smallest legal tile: 8 sublanes x 128 lanes = 1024 rows per step.
    min_rows = SUBLANES * LANE
    # Clamp the caller's lane width to a multiple of 128 (lowering rule).
    max_tile_lanes = max(LANE, (int(max_tile_lanes) // LANE) * LANE)
    max_rows = SUBLANES * max_tile_lanes             # <= 131072 rows/step

    rows_needed = _round_up(max(B, 1), min_rows)
    if rows_needed <= min_rows:
        rows_per_tile = min_rows
    else:
        # Prefer >= 2 grid steps (megacore on v7x), but cap the tile so
        # double-buffered VMEM stays ~7 MB (fits v5e's 16 MiB scoped default).
        rows_per_tile = min(max_rows, _round_up(rows_needed // 2, min_rows))
    tbl = rows_per_tile // SUBLANES                  # lane width per step
    b_pad = _round_up(rows_needed, rows_per_tile)
    n_lanes = b_pad // SUBLANES
    grid = (b_pad // rows_per_tile,)

    # ---- Input packing ---------------------------------------------------
    # Single pad+transpose+reshape producer; allow_input_fusion below lets
    # XLA fuse it into the pallas_call input instead of a separate HBM pass.
    xp = x if b_pad == B else jnp.pad(x, ((0, b_pad - B), (0, 0)))
    x_t = jnp.transpose(xp).reshape(IN_FEATURES, SUBLANES, n_lanes)

    out = pl.pallas_call(
        mlp_kernel,
        out_shape=jax.ShapeDtypeStruct((SUBLANES, n_lanes), jnp.float32),
        grid=grid,
        in_specs=[
            pl.BlockSpec(memory_space=pltpu.SMEM),   # w1 (4, 6), resident
            pl.BlockSpec(memory_space=pltpu.SMEM),   # b1 (4,)
            pl.BlockSpec(memory_space=pltpu.SMEM),   # w2 (1, 4)
            pl.BlockSpec(memory_space=pltpu.SMEM),   # b2 (1,)
            pl.BlockSpec((IN_FEATURES, SUBLANES, tbl), lambda i: (0, 0, i)),
        ],
        out_specs=pl.BlockSpec((SUBLANES, tbl), lambda i: (0, i)),
        compiler_params=pltpu.CompilerParams(
            dimension_semantics=("parallel",),       # megacore sharding (v7x)
            allow_input_fusion=[False, False, False, False, True],
        ),
        cost_estimate=pl.CostEstimate(
            flops=56 * b_pad,                        # 48 (layer1) + 8 (layer2)
            transcendentals=5 * b_pad,               # 5 sigmoids per row
            bytes_accessed=28 * b_pad,               # 24 B in + 4 B out per row
        ),
    )(w1, b1, w2, b2, x_t)

    # Row i lives at out[i // n_lanes, i % n_lanes]; flatten-then-slice is the
    # lane-dense way to recover batch order (final (B, 1) reshape is free).
    return out.reshape(-1)[:B].reshape(B, 1)


def init_params(key):
    """Deterministic init mimicking torch.nn.Linear defaults (torch layout)."""
    k1, k2, k3, k4 = jax.random.split(key, 4)

    bound1 = 1.0 / jnp.sqrt(6.0)
    w1 = jax.random.uniform(k1, (HIDDEN, IN_FEATURES), jnp.float32, -bound1, bound1)
    b1 = jax.random.uniform(k2, (HIDDEN,), jnp.float32, -bound1, bound1)

    bound2 = 1.0 / jnp.sqrt(4.0)
    w2 = jax.random.uniform(k3, (1, HIDDEN), jnp.float32, -bound2, bound2)
    b2 = jax.random.uniform(k4, (1,), jnp.float32, -bound2, bound2)
    return w1, b1, w2, b2


def reference_forward(x, w1, b1, w2, b2):
    h = jax.nn.sigmoid(x @ w1.T + b1)
    return jax.nn.sigmoid(h @ w2.T + b2)


if __name__ == "__main__":
    key = jax.random.PRNGKey(0)
    k_x, k_p, k_x2 = jax.random.split(key, 3)

    w1, b1, w2, b2 = init_params(k_p)

    # Small batch of Titanic-style rows (single grid step, minimal tile).
    B = 8
    x = jax.random.normal(k_x, (B, IN_FEATURES), dtype=jnp.float32)
    out = jax.block_until_ready(mlp_forward(x, w1, b1, w2, b2))
    ref = reference_forward(x, w1, b1, w2, b2)
    assert out.shape == (B, 1)
    assert jnp.allclose(out, ref, atol=1e-5, rtol=1e-5), (out, ref)

    # Unaligned, larger batch: exercises padding + multi-step grid
    # (rows_needed = 4096 -> 2 grid steps of 2048 rows each).
    B2 = 3100
    x2 = jax.random.normal(k_x2, (B2, IN_FEATURES), dtype=jnp.float32)
    out2 = jax.block_until_ready(mlp_forward(x2, w1, b1, w2, b2))
    ref2 = reference_forward(x2, w1, b1, w2, b2)
    assert out2.shape == (B2, 1)
    assert jnp.allclose(out2, ref2, atol=1e-5, rtol=1e-5), (out2, ref2)

    print("KERNEL_OK")
</pallas_src>

<mosaic_0001>
module attributes {stable_mosaic.version = 11 : i64} {
  func.func @mlp_kernel(%arg0: i32, %arg1: memref<4x6xf32, #tpu.memory_space<smem>>, %arg2: memref<4xf32, #tpu.memory_space<smem>>, %arg3: memref<1x4xf32, #tpu.memory_space<smem>>, %arg4: memref<1xf32, #tpu.memory_space<smem>>, %arg5: memref<6x8x128xf32, #tpu.memory_space<vmem>>, %arg6: memref<8x128xf32, #tpu.memory_space<vmem>>) attributes {dimension_semantics = [#tpu.dimension_semantics<parallel>], iteration_bounds = array<i64: 1>, scalar_prefetch = 0 : i64, scratch_operands = 0 : i64, tpu.core_type = #tpu.core_type<tc>, window_params = [{transform_indices = @transform_0, window_bounds = array<i64: 4, 6>}, {transform_indices = @transform_1, window_bounds = array<i64: 4>}, {transform_indices = @transform_2, window_bounds = array<i64: 1, 4>}, {transform_indices = @transform_3, window_bounds = array<i64: 1>}, {transform_indices = @transform_4, window_bounds = array<i64: 6, 8, 128>}, {transform_indices = @transform_5, window_bounds = array<i64: 8, 128>}]} {
    %c0 = arith.constant 0 : index
    %c0_0 = arith.constant 0 : index
    %c0_1 = arith.constant 0 : index
    %0 = vector.load %arg5[%c0, %c0_0, %c0_1] : memref<6x8x128xf32, #tpu.memory_space<vmem>>, vector<6x8x128xf32>
    %1 = vector.extract_strided_slice %0 {offsets = [0, 0, 0], sizes = [1, 8, 128], strides = [1, 1, 1]} : vector<6x8x128xf32> to vector<1x8x128xf32>
    %2 = vector.shape_cast %1 : vector<1x8x128xf32> to vector<8x128xf32>
    %c0_2 = arith.constant 0 : index
    %c0_3 = arith.constant 0 : index
    %3 = memref.load %arg1[%c0_2, %c0_3] : memref<4x6xf32, #tpu.memory_space<smem>>
    %4 = vector.broadcast %3 : f32 to vector<8x128xf32>
    %5 = arith.mulf %2, %4 : vector<8x128xf32>
    %c0_4 = arith.constant 0 : index
    %6 = memref.load %arg2[%c0_4] : memref<4xf32, #tpu.memory_space<smem>>
    %7 = vector.broadcast %6 : f32 to vector<8x128xf32>
    %8 = arith.addf %5, %7 : vector<8x128xf32>
    %9 = vector.extract_strided_slice %0 {offsets = [1, 0, 0], sizes = [1, 8, 128], strides = [1, 1, 1]} : vector<6x8x128xf32> to vector<1x8x128xf32>
    %10 = vector.shape_cast %9 : vector<1x8x128xf32> to vector<8x128xf32>
    %c0_5 = arith.constant 0 : index
    %c1 = arith.constant 1 : index
    %11 = memref.load %arg1[%c0_5, %c1] : memref<4x6xf32, #tpu.memory_space<smem>>
    %12 = vector.broadcast %11 : f32 to vector<8x128xf32>
    %13 = arith.mulf %10, %12 : vector<8x128xf32>
    %14 = arith.addf %8, %13 : vector<8x128xf32>
    %15 = vector.extract_strided_slice %0 {offsets = [2, 0, 0], sizes = [1, 8, 128], strides = [1, 1, 1]} : vector<6x8x128xf32> to vector<1x8x128xf32>
    %16 = vector.shape_cast %15 : vector<1x8x128xf32> to vector<8x128xf32>
    %c0_6 = arith.constant 0 : index
    %c2 = arith.constant 2 : index
    %17 = memref.load %arg1[%c0_6, %c2] : memref<4x6xf32, #tpu.memory_space<smem>>
    %18 = vector.broadcast %17 : f32 to vector<8x128xf32>
    %19 = arith.mulf %16, %18 : vector<8x128xf32>
    %20 = arith.addf %14, %19 : vector<8x128xf32>
    %21 = vector.extract_strided_slice %0 {offsets = [3, 0, 0], sizes = [1, 8, 128], strides = [1, 1, 1]} : vector<6x8x128xf32> to vector<1x8x128xf32>
    %22 = vector.shape_cast %21 : vector<1x8x128xf32> to vector<8x128xf32>
    %c0_7 = arith.constant 0 : index
    %c3 = arith.constant 3 : index
    %23 = memref.load %arg1[%c0_7, %c3] : memref<4x6xf32, #tpu.memory_space<smem>>
    %24 = vector.broadcast %23 : f32 to vector<8x128xf32>
    %25 = arith.mulf %22, %24 : vector<8x128xf32>
    %26 = arith.addf %20, %25 : vector<8x128xf32>
    %27 = vector.extract_strided_slice %0 {offsets = [4, 0, 0], sizes = [1, 8, 128], strides = [1, 1, 1]} : vector<6x8x128xf32> to vector<1x8x128xf32>
    %28 = vector.shape_cast %27 : vector<1x8x128xf32> to vector<8x128xf32>
    %c0_8 = arith.constant 0 : index
    %c4 = arith.constant 4 : index
    %29 = memref.load %arg1[%c0_8, %c4] : memref<4x6xf32, #tpu.memory_space<smem>>
    %30 = vector.broadcast %29 : f32 to vector<8x128xf32>
    %31 = arith.mulf %28, %30 : vector<8x128xf32>
    %32 = arith.addf %26, %31 : vector<8x128xf32>
    %33 = vector.extract_strided_slice %0 {offsets = [5, 0, 0], sizes = [1, 8, 128], strides = [1, 1, 1]} : vector<6x8x128xf32> to vector<1x8x128xf32>
    %34 = vector.shape_cast %33 : vector<1x8x128xf32> to vector<8x128xf32>
    %c0_9 = arith.constant 0 : index
    %c5 = arith.constant 5 : index
    %35 = memref.load %arg1[%c0_9, %c5] : memref<4x6xf32, #tpu.memory_space<smem>>
    %36 = vector.broadcast %35 : f32 to vector<8x128xf32>
    %37 = arith.mulf %34, %36 : vector<8x128xf32>
    %38 = arith.addf %32, %37 : vector<8x128xf32>
    %39 = arith.negf %38 : vector<8x128xf32>
    %40 = math.exp %39 : vector<8x128xf32>
    %cst = arith.constant 1.000000e+00 : f32
    %41 = vector.broadcast %cst : f32 to vector<8x128xf32>
    %42 = arith.addf %41, %40 : vector<8x128xf32>
    %43 = arith.divf %41, %42 : vector<8x128xf32>
    %c0_10 = arith.constant 0 : index
    %c0_11 = arith.constant 0 : index
    %44 = memref.load %arg3[%c0_10, %c0_11] : memref<1x4xf32, #tpu.memory_space<smem>>
    %45 = vector.broadcast %44 : f32 to vector<8x128xf32>
    %46 = arith.mulf %43, %45 : vector<8x128xf32>
    %c0_12 = arith.constant 0 : index
    %47 = memref.load %arg4[%c0_12] : memref<1xf32, #tpu.memory_space<smem>>
    %48 = vector.broadcast %47 : f32 to vector<8x128xf32>
    %49 = arith.addf %46, %48 : vector<8x128xf32>
    %50 = vector.extract_strided_slice %0 {offsets = [0, 0, 0], sizes = [1, 8, 128], strides = [1, 1, 1]} : vector<6x8x128xf32> to vector<1x8x128xf32>
    %51 = vector.shape_cast %50 : vector<1x8x128xf32> to vector<8x128xf32>
    %c1_13 = arith.constant 1 : index
    %c0_14 = arith.constant 0 : index
    %52 = memref.load %arg1[%c1_13, %c0_14] : memref<4x6xf32, #tpu.memory_space<smem>>
    %53 = vector.broadcast %52 : f32 to vector<8x128xf32>
    %54 = arith.mulf %51, %53 : vector<8x128xf32>
    %c1_15 = arith.constant 1 : index
    %55 = memref.load %arg2[%c1_15] : memref<4xf32, #tpu.memory_space<smem>>
    %56 = vector.broadcast %55 : f32 to vector<8x128xf32>
    %57 = arith.addf %54, %56 : vector<8x128xf32>
    %58 = vector.extract_strided_slice %0 {offsets = [1, 0, 0], sizes = [1, 8, 128], strides = [1, 1, 1]} : vector<6x8x128xf32> to vector<1x8x128xf32>
    %59 = vector.shape_cast %58 : vector<1x8x128xf32> to vector<8x128xf32>
    %c1_16 = arith.constant 1 : index
    %c1_17 = arith.constant 1 : index
    %60 = memref.load %arg1[%c1_16, %c1_17] : memref<4x6xf32, #tpu.memory_space<smem>>
    %61 = vector.broadcast %60 : f32 to vector<8x128xf32>
    %62 = arith.mulf %59, %61 : vector<8x128xf32>
    %63 = arith.addf %57, %62 : vector<8x128xf32>
    %64 = vector.extract_strided_slice %0 {offsets = [2, 0, 0], sizes = [1, 8, 128], strides = [1, 1, 1]} : vector<6x8x128xf32> to vector<1x8x128xf32>
    %65 = vector.shape_cast %64 : vector<1x8x128xf32> to vector<8x128xf32>
    %c1_18 = arith.constant 1 : index
    %c2_19 = arith.constant 2 : index
    %66 = memref.load %arg1[%c1_18, %c2_19] : memref<4x6xf32, #tpu.memory_space<smem>>
    %67 = vector.broadcast %66 : f32 to vector<8x128xf32>
    %68 = arith.mulf %65, %67 : vector<8x128xf32>
    %69 = arith.addf %63, %68 : vector<8x128xf32>
    %70 = vector.extract_strided_slice %0 {offsets = [3, 0, 0], sizes = [1, 8, 128], strides = [1, 1, 1]} : vector<6x8x128xf32> to vector<1x8x128xf32>
    %71 = vector.shape_cast %70 : vector<1x8x128xf32> to vector<8x128xf32>
    %c1_20 = arith.constant 1 : index
    %c3_21 = arith.constant 3 : index
    %72 = memref.load %arg1[%c1_20, %c3_21] : memref<4x6xf32, #tpu.memory_space<smem>>
    %73 = vector.broadcast %72 : f32 to vector<8x128xf32>
    %74 = arith.mulf %71, %73 : vector<8x128xf32>
    %75 = arith.addf %69, %74 : vector<8x128xf32>
    %76 = vector.extract_strided_slice %0 {offsets = [4, 0, 0], sizes = [1, 8, 128], strides = [1, 1, 1]} : vector<6x8x128xf32> to vector<1x8x128xf32>
    %77 = vector.shape_cast %76 : vector<1x8x128xf32> to vector<8x128xf32>
    %c1_22 = arith.constant 1 : index
    %c4_23 = arith.constant 4 : index
    %78 = memref.load %arg1[%c1_22, %c4_23] : memref<4x6xf32, #tpu.memory_space<smem>>
    %79 = vector.broadcast %78 : f32 to vector<8x128xf32>
    %80 = arith.mulf %77, %79 : vector<8x128xf32>
    %81 = arith.addf %75, %80 : vector<8x128xf32>
    %82 = vector.extract_strided_slice %0 {offsets = [5, 0, 0], sizes = [1, 8, 128], strides = [1, 1, 1]} : vector<6x8x128xf32> to vector<1x8x128xf32>
    %83 = vector.shape_cast %82 : vector<1x8x128xf32> to vector<8x128xf32>
    %c1_24 = arith.constant 1 : index
    %c5_25 = arith.constant 5 : index
    %84 = memref.load %arg1[%c1_24, %c5_25] : memref<4x6xf32, #tpu.memory_space<smem>>
    %85 = vector.broadcast %84 : f32 to vector<8x128xf32>
    %86 = arith.mulf %83, %85 : vector<8x128xf32>
    %87 = arith.addf %81, %86 : vector<8x128xf32>
    %88 = arith.negf %87 : vector<8x128xf32>
    %89 = math.exp %88 : vector<8x128xf32>
    %cst_26 = arith.constant 1.000000e+00 : f32
    %90 = vector.broadcast %cst_26 : f32 to vector<8x128xf32>
    %91 = arith.addf %90, %89 : vector<8x128xf32>
    %92 = arith.divf %90, %91 : vector<8x128xf32>
    %c0_27 = arith.constant 0 : index
    %c1_28 = arith.constant 1 : index
    %93 = memref.load %arg3[%c0_27, %c1_28] : memref<1x4xf32, #tpu.memory_space<smem>>
    %94 = vector.broadcast %93 : f32 to vector<8x128xf32>
    %95 = arith.mulf %92, %94 : vector<8x128xf32>
    %96 = arith.addf %49, %95 : vector<8x128xf32>
    %97 = vector.extract_strided_slice %0 {offsets = [0, 0, 0], sizes = [1, 8, 128], strides = [1, 1, 1]} : vector<6x8x128xf32> to vector<1x8x128xf32>
    %98 = vector.shape_cast %97 : vector<1x8x128xf32> to vector<8x128xf32>
    %c2_29 = arith.constant 2 : index
    %c0_30 = arith.constant 0 : index
    %99 = memref.load %arg1[%c2_29, %c0_30] : memref<4x6xf32, #tpu.memory_space<smem>>
    %100 = vector.broadcast %99 : f32 to vector<8x128xf32>
    %101 = arith.mulf %98, %100 : vector<8x128xf32>
    %c2_31 = arith.constant 2 : index
    %102 = memref.load %arg2[%c2_31] : memref<4xf32, #tpu.memory_space<smem>>
    %103 = vector.broadcast %102 : f32 to vector<8x128xf32>
    %104 = arith.addf %101, %103 : vector<8x128xf32>
    %105 = vector.extract_strided_slice %0 {offsets = [1, 0, 0], sizes = [1, 8, 128], strides = [1, 1, 1]} : vector<6x8x128xf32> to vector<1x8x128xf32>
    %106 = vector.shape_cast %105 : vector<1x8x128xf32> to vector<8x128xf32>
    %c2_32 = arith.constant 2 : index
    %c1_33 = arith.constant 1 : index
    %107 = memref.load %arg1[%c2_32, %c1_33] : memref<4x6xf32, #tpu.memory_space<smem>>
    %108 = vector.broadcast %107 : f32 to vector<8x128xf32>
    %109 = arith.mulf %106, %108 : vector<8x128xf32>
    %110 = arith.addf %104, %109 : vector<8x128xf32>
    %111 = vector.extract_strided_slice %0 {offsets = [2, 0, 0], sizes = [1, 8, 128], strides = [1, 1, 1]} : vector<6x8x128xf32> to vector<1x8x128xf32>
    %112 = vector.shape_cast %111 : vector<1x8x128xf32> to vector<8x128xf32>
    %c2_34 = arith.constant 2 : index
    %c2_35 = arith.constant 2 : index
    %113 = memref.load %arg1[%c2_34, %c2_35] : memref<4x6xf32, #tpu.memory_space<smem>>
    %114 = vector.broadcast %113 : f32 to vector<8x128xf32>
    %115 = arith.mulf %112, %114 : vector<8x128xf32>
    %116 = arith.addf %110, %115 : vector<8x128xf32>
    %117 = vector.extract_strided_slice %0 {offsets = [3, 0, 0], sizes = [1, 8, 128], strides = [1, 1, 1]} : vector<6x8x128xf32> to vector<1x8x128xf32>
    %118 = vector.shape_cast %117 : vector<1x8x128xf32> to vector<8x128xf32>
    %c2_36 = arith.constant 2 : index
    %c3_37 = arith.constant 3 : index
    %119 = memref.load %arg1[%c2_36, %c3_37] : memref<4x6xf32, #tpu.memory_space<smem>>
    %120 = vector.broadcast %119 : f32 to vector<8x128xf32>
    %121 = arith.mulf %118, %120 : vector<8x128xf32>
    %122 = arith.addf %116, %121 : vector<8x128xf32>
    %123 = vector.extract_strided_slice %0 {offsets = [4, 0, 0], sizes = [1, 8, 128], strides = [1, 1, 1]} : vector<6x8x128xf32> to vector<1x8x128xf32>
    %124 = vector.shape_cast %123 : vector<1x8x128xf32> to vector<8x128xf32>
    %c2_38 = arith.constant 2 : index
    %c4_39 = arith.constant 4 : index
    %125 = memref.load %arg1[%c2_38, %c4_39] : memref<4x6xf32, #tpu.memory_space<smem>>
    %126 = vector.broadcast %125 : f32 to vector<8x128xf32>
    %127 = arith.mulf %124, %126 : vector<8x128xf32>
    %128 = arith.addf %122, %127 : vector<8x128xf32>
    %129 = vector.extract_strided_slice %0 {offsets = [5, 0, 0], sizes = [1, 8, 128], strides = [1, 1, 1]} : vector<6x8x128xf32> to vector<1x8x128xf32>
    %130 = vector.shape_cast %129 : vector<1x8x128xf32> to vector<8x128xf32>
    %c2_40 = arith.constant 2 : index
    %c5_41 = arith.constant 5 : index
    %131 = memref.load %arg1[%c2_40, %c5_41] : memref<4x6xf32, #tpu.memory_space<smem>>
    %132 = vector.broadcast %131 : f32 to vector<8x128xf32>
    %133 = arith.mulf %130, %132 : vector<8x128xf32>
    %134 = arith.addf %128, %133 : vector<8x128xf32>
    %135 = arith.negf %134 : vector<8x128xf32>
    %136 = math.exp %135 : vector<8x128xf32>
    %cst_42 = arith.constant 1.000000e+00 : f32
    %137 = vector.broadcast %cst_42 : f32 to vector<8x128xf32>
    %138 = arith.addf %137, %136 : vector<8x128xf32>
    %139 = arith.divf %137, %138 : vector<8x128xf32>
    %c0_43 = arith.constant 0 : index
    %c2_44 = arith.constant 2 : index
    %140 = memref.load %arg3[%c0_43, %c2_44] : memref<1x4xf32, #tpu.memory_space<smem>>
    %141 = vector.broadcast %140 : f32 to vector<8x128xf32>
    %142 = arith.mulf %139, %141 : vector<8x128xf32>
    %143 = arith.addf %96, %142 : vector<8x128xf32>
    %144 = vector.extract_strided_slice %0 {offsets = [0, 0, 0], sizes = [1, 8, 128], strides = [1, 1, 1]} : vector<6x8x128xf32> to vector<1x8x128xf32>
    %145 = vector.shape_cast %144 : vector<1x8x128xf32> to vector<8x128xf32>
    %c3_45 = arith.constant 3 : index
    %c0_46 = arith.constant 0 : index
    %146 = memref.load %arg1[%c3_45, %c0_46] : memref<4x6xf32, #tpu.memory_space<smem>>
    %147 = vector.broadcast %146 : f32 to vector<8x128xf32>
    %148 = arith.mulf %145, %147 : vector<8x128xf32>
    %c3_47 = arith.constant 3 : index
    %149 = memref.load %arg2[%c3_47] : memref<4xf32, #tpu.memory_space<smem>>
    %150 = vector.broadcast %149 : f32 to vector<8x128xf32>
    %151 = arith.addf %148, %150 : vector<8x128xf32>
    %152 = vector.extract_strided_slice %0 {offsets = [1, 0, 0], sizes = [1, 8, 128], strides = [1, 1, 1]} : vector<6x8x128xf32> to vector<1x8x128xf32>
    %153 = vector.shape_cast %152 : vector<1x8x128xf32> to vector<8x128xf32>
    %c3_48 = arith.constant 3 : index
    %c1_49 = arith.constant 1 : index
    %154 = memref.load %arg1[%c3_48, %c1_49] : memref<4x6xf32, #tpu.memory_space<smem>>
    %155 = vector.broadcast %154 : f32 to vector<8x128xf32>
    %156 = arith.mulf %153, %155 : vector<8x128xf32>
    %157 = arith.addf %151, %156 : vector<8x128xf32>
    %158 = vector.extract_strided_slice %0 {offsets = [2, 0, 0], sizes = [1, 8, 128], strides = [1, 1, 1]} : vector<6x8x128xf32> to vector<1x8x128xf32>
    %159 = vector.shape_cast %158 : vector<1x8x128xf32> to vector<8x128xf32>
    %c3_50 = arith.constant 3 : index
    %c2_51 = arith.constant 2 : index
    %160 = memref.load %arg1[%c3_50, %c2_51] : memref<4x6xf32, #tpu.memory_space<smem>>
    %161 = vector.broadcast %160 : f32 to vector<8x128xf32>
    %162 = arith.mulf %159, %161 : vector<8x128xf32>
    %163 = arith.addf %157, %162 : vector<8x128xf32>
    %164 = vector.extract_strided_slice %0 {offsets = [3, 0, 0], sizes = [1, 8, 128], strides = [1, 1, 1]} : vector<6x8x128xf32> to vector<1x8x128xf32>
    %165 = vector.shape_cast %164 : vector<1x8x128xf32> to vector<8x128xf32>
    %c3_52 = arith.constant 3 : index
    %c3_53 = arith.constant 3 : index
    %166 = memref.load %arg1[%c3_52, %c3_53] : memref<4x6xf32, #tpu.memory_space<smem>>
    %167 = vector.broadcast %166 : f32 to vector<8x128xf32>
    %168 = arith.mulf %165, %167 : vector<8x128xf32>
    %169 = arith.addf %163, %168 : vector<8x128xf32>
    %170 = vector.extract_strided_slice %0 {offsets = [4, 0, 0], sizes = [1, 8, 128], strides = [1, 1, 1]} : vector<6x8x128xf32> to vector<1x8x128xf32>
    %171 = vector.shape_cast %170 : vector<1x8x128xf32> to vector<8x128xf32>
    %c3_54 = arith.constant 3 : index
    %c4_55 = arith.constant 4 : index
    %172 = memref.load %arg1[%c3_54, %c4_55] : memref<4x6xf32, #tpu.memory_space<smem>>
    %173 = vector.broadcast %172 : f32 to vector<8x128xf32>
    %174 = arith.mulf %171, %173 : vector<8x128xf32>
    %175 = arith.addf %169, %174 : vector<8x128xf32>
    %176 = vector.extract_strided_slice %0 {offsets = [5, 0, 0], sizes = [1, 8, 128], strides = [1, 1, 1]} : vector<6x8x128xf32> to vector<1x8x128xf32>
    %177 = vector.shape_cast %176 : vector<1x8x128xf32> to vector<8x128xf32>
    %c3_56 = arith.constant 3 : index
    %c5_57 = arith.constant 5 : index
    %178 = memref.load %arg1[%c3_56, %c5_57] : memref<4x6xf32, #tpu.memory_space<smem>>
    %179 = vector.broadcast %178 : f32 to vector<8x128xf32>
    %180 = arith.mulf %177, %179 : vector<8x128xf32>
    %181 = arith.addf %175, %180 : vector<8x128xf32>
    %182 = arith.negf %181 : vector<8x128xf32>
    %183 = math.exp %182 : vector<8x128xf32>
    %cst_58 = arith.constant 1.000000e+00 : f32
    %184 = vector.broadcast %cst_58 : f32 to vector<8x128xf32>
    %185 = arith.addf %184, %183 : vector<8x128xf32>
    %186 = arith.divf %184, %185 : vector<8x128xf32>
    %c0_59 = arith.constant 0 : index
    %c3_60 = arith.constant 3 : index
    %187 = memref.load %arg3[%c0_59, %c3_60] : memref<1x4xf32, #tpu.memory_space<smem>>
    %188 = vector.broadcast %187 : f32 to vector<8x128xf32>
    %189 = arith.mulf %186, %188 : vector<8x128xf32>
    %190 = arith.addf %143, %189 : vector<8x128xf32>
    %191 = arith.negf %190 : vector<8x128xf32>
    %192 = math.exp %191 : vector<8x128xf32>
    %cst_61 = arith.constant 1.000000e+00 : f32
    %193 = vector.broadcast %cst_61 : f32 to vector<8x128xf32>
    %194 = arith.addf %193, %192 : vector<8x128xf32>
    %195 = arith.divf %193, %194 : vector<8x128xf32>
    %c0_62 = arith.constant 0 : index
    %c0_63 = arith.constant 0 : index
    %196 = vector.load %arg6[%c0_62, %c0_63] : memref<8x128xf32, #tpu.memory_space<vmem>>, vector<8x128xf32>
    tpu.vector_store %arg6[%c0_62, %c0_63], %195 {strides = array<i32>} : memref<8x128xf32, #tpu.memory_space<vmem>>, vector<8x128xf32>,
    return
  }
  func.func @transform_0(%arg0: i32) -> (i32, i32) {
    %c0_i32 = arith.constant 0 : i32
    %c0_i32_0 = arith.constant 0 : i32
    %c0_i32_1 = arith.constant 0 : i32
    return %c0_i32, %c0_i32_0 : i32, i32
  }
  func.func @transform_1(%arg0: i32) -> i32 {
    %c0_i32 = arith.constant 0 : i32
    %c0_i32_0 = arith.constant 0 : i32
    return %c0_i32 : i32
  }
  func.func @transform_2(%arg0: i32) -> (i32, i32) {
    %c0_i32 = arith.constant 0 : i32
    %c0_i32_0 = arith.constant 0 : i32
    %c0_i32_1 = arith.constant 0 : i32
    return %c0_i32, %c0_i32_0 : i32, i32
  }
  func.func @transform_3(%arg0: i32) -> i32 {
    %c0_i32 = arith.constant 0 : i32
    %c0_i32_0 = arith.constant 0 : i32
    return %c0_i32 : i32
  }
  func.func @transform_4(%arg0: i32) -> (i32, i32, i32) {
    %c0_i32 = arith.constant 0 : i32
    %c0_i32_0 = arith.constant 0 : i32
    %c0_i32_1 = arith.constant 0 : i32
    return %c0_i32, %c0_i32_0, %arg0 : i32, i32, i32
  }
  func.func @transform_5(%arg0: i32) -> (i32, i32) {
    %c0_i32 = arith.constant 0 : i32
    %c0_i32_0 = arith.constant 0 : i32
    return %c0_i32, %arg0 : i32, i32
  }
}

</mosaic_0001>

<llo_original>
// kernel: tpu_custom_call.1
$region0: #{tpu_custom_call.1}
  #allocation0 [shape = 'u32[]', space=smem, size = 0x4, offset = 0x4, fixed_abs, tag = 'smem constant byte address 0x4 - core index']
  #allocation1 [shape = 'u32[72,128]{1,0:T(1,128)}', space=vmem, size = 0x9000, scoped, tag = 'internal scratch']
  #allocation2 [shape = 'f32[1]{0:T(128)S(6)}', space=smem, size = 0x200, scoped, tag = 'scoped memory for tpu_custom_call.1']
  %s0 = inlined_call_operand.hbm [shape: f32[4,6], index: 0, kind: input, shape index: {}]
  %s1 = inlined_call_operand.vmem [shape: f32[4], index: 1, kind: input, shape index: {}]
  %s2 = inlined_call_operand.vmem [shape: f32[1,4], index: 2, kind: input, shape index: {}]
  %s3 = inlined_call_operand.<no memory space> [shape: f32[1], index: 3, kind: input, shape index: {}]
  %s4 = inlined_call_operand.hbm [shape: f32[6,8,128], index: 4, kind: input, shape index: {}]
  %s5 = inlined_call_operand.hbm [shape: f32[8,128], index: 5, kind: output, shape index: {}]
  %s6 = sld [smem:[#allocation0]]
  $region46: #{tpu_custom_call.1} parent=0
    _
  %s8 = ssub.s32 1, %s6
  %s9 = scalar_select 0, %s8, %s6
  %10 = sst [smem:[#allocation2]] %s3
  $region1: #{tpu_custom_call.1} parent=0
    #allocation3 [shape = 'u8[2048]{0}', space=smem, size = 0x800, scoped, tag = 'input window, operand 0, single buffered']
    #allocation4 [shape = 's32[1]{0}', space=sflag, size = 0x4, scoped, tag = 'scoped memory for tpu_custom_call.1']
    #allocation5 [shape = 's32[1]{0}', space=sflag, size = 0x4, scoped, tag = 'scoped memory for tpu_custom_call.1']
    #allocation6 [shape = 's32[1]{0}', space=sflag, size = 0x4, scoped, tag = 'scoped memory for tpu_custom_call.1']
    #allocation7 [shape = 's32[1]{0}', space=sflag, size = 0x4, scoped, tag = 'scoped memory for tpu_custom_call.1']
    #allocation8 [shape = 'u8[512]{0}', space=smem, size = 0x200, scoped, tag = 'input window, operand 1, single buffered']
    #allocation9 [shape = 'u8[512]{0}', space=smem, size = 0x200, scoped, tag = 'input window, operand 2, single buffered']
    #allocation10 [shape = 's32[1]{0}', space=sflag, size = 0x4, scoped, tag = 'scoped memory for tpu_custom_call.1']
    #allocation11 [shape = 'u8[24576]{0}', space=vmem, size = 0x6000, scoped, tag = 'input window, operand 4, single buffered']
    #allocation12 [shape = 'u8[4096]{0}', space=vmem, size = 0x1000, scoped, tag = 'output window, operand 0, single buffered']
    %11 = vsyncpa [#allocation6], 0
    %12 = vsyncpa [#allocation7], 0
    %13 = vsyncpa [#allocation10], 0
    %14 = vsyncpa [#allocation4], 0
    %15 = vsyncpa [#allocation5], 0
    // Predicated region
    $region2: #{tpu_custom_call.1} parent=1 // pred_check
      _
    $region3: #{tpu_custom_call.1} parent=1 // pred_check_branch
      %17 = sbr.rel (0) target = $region5
    $region4: #{tpu_custom_call.1} parent=1 // pred_region
      %19 = vsyncadd [#allocation6], 0
      %s21 = sshll.u32 %s0, 4
      %s22 = int_to_ptr.hbm [resolvable:$true] %s21
      %24 = dma.hbm_to_smem %s22, 64, [#allocation3], [#allocation6]
    $region5: #{tpu_custom_call.1} parent=1 // pred_fallthru
      _
    // Predicated region
    $region6: #{tpu_custom_call.1} parent=1 // pred_check
      _
    $region7: #{tpu_custom_call.1} parent=1 // pred_check_branch
      %26 = sbr.rel (0) target = $region9
    $region8: #{tpu_custom_call.1} parent=1 // pred_region
      %28 = vsyncadd [#allocation7], 0
      %s30 = sshll.u32 %s1, 4
      %s31 = int_to_ptr.vmem [resolvable:$true] %s30
      %33 = dma.vmem_to_smem %s31, 16, [#allocation8], [#allocation7]
    $region9: #{tpu_custom_call.1} parent=1 // pred_fallthru
      _
    // Predicated region
    $region10: #{tpu_custom_call.1} parent=1 // pred_check
      _
    $region11: #{tpu_custom_call.1} parent=1 // pred_check_branch
      %35 = sbr.rel (0) target = $region13
    $region12: #{tpu_custom_call.1} parent=1 // pred_region
      %37 = vsyncadd [#allocation10], 0
      %s39 = sshll.u32 %s2, 4
      %s40 = int_to_ptr.vmem [resolvable:$true] %s39
      %42 = dma.vmem_to_smem %s40, 16, [#allocation9], [#allocation10]
    $region13: #{tpu_custom_call.1} parent=1 // pred_fallthru
      _
    // Predicated region
    $region14: #{tpu_custom_call.1} parent=1 // pred_check
      _
    $region15: #{tpu_custom_call.1} parent=1 // pred_check_branch
      %44 = sbr.rel (0) target = $region17
    $region16: #{tpu_custom_call.1} parent=1 // pred_region
      _
    $region17: #{tpu_custom_call.1} parent=1 // pred_fallthru
      _
    // Predicated region
    $region18: #{tpu_custom_call.1} parent=1 // pred_check
      _
    $region19: #{tpu_custom_call.1} parent=1 // pred_check_branch
      %46 = sbr.rel (0) target = $region21
    $region20: #{tpu_custom_call.1} parent=1 // pred_region
      %48 = vsyncadd [#allocation4], 0
      %s49 = sshll.u32 %s4, 4
      %s50 = int_to_ptr.hbm [resolvable:$true] %s49
      %s51 = sshll.u32 [#allocation11], 4
      %s52 = int_to_ptr.vmem [resolvable:$true] %s51
      %57 = dma.hbm_to_vmem [thread:$0]  %s50, 768, %s52, [#allocation4], 128, 128, 8
    $region21: #{tpu_custom_call.1} parent=1 // pred_fallthru
      _
    // Predicated region
    $region22: #{tpu_custom_call.1} parent=1 // pred_check
      _
    $region23: #{tpu_custom_call.1} parent=1 // pred_check_branch
      %59 = sbr.rel (0) target = $region25
    $region24: #{tpu_custom_call.1} parent=1 // pred_region
      %61 = dma.done [#allocation6], 64
    $region25: #{tpu_custom_call.1} parent=1 // pred_fallthru
      _
    // Predicated region
    $region26: #{tpu_custom_call.1} parent=1 // pred_check
      _
    $region27: #{tpu_custom_call.1} parent=1 // pred_check_branch
      %63 = sbr.rel (0) target = $region29
    $region28: #{tpu_custom_call.1} parent=1 // pred_region
      %65 = dma.done [#allocation7], 16
    $region29: #{tpu_custom_call.1} parent=1 // pred_fallthru
      _
    // Predicated region
    $region30: #{tpu_custom_call.1} parent=1 // pred_check
      _
    $region31: #{tpu_custom_call.1} parent=1 // pred_check_branch
      %67 = sbr.rel (0) target = $region33
    $region32: #{tpu_custom_call.1} parent=1 // pred_region
      %69 = dma.done [#allocation10], 16
    $region33: #{tpu_custom_call.1} parent=1 // pred_fallthru
      _
    // Predicated region
    $region34: #{tpu_custom_call.1} parent=1 // pred_check
      _
    $region35: #{tpu_custom_call.1} parent=1 // pred_check_branch
      %71 = sbr.rel (0) target = $region37
    $region36: #{tpu_custom_call.1} parent=1 // pred_region
      %73 = dma.done [#allocation4], 768
    $region37: #{tpu_custom_call.1} parent=1 // pred_fallthru
      _
    %74 = sfence
    %v75 = vld [vmem:[#allocation11] sm:$0xff]
    %v76 = vld [vmem:[#allocation11 + $0x8] sm:$0xff]
    %v77 = vld [vmem:[#allocation11 + $0x10] sm:$0xff]
    %v78 = vld [vmem:[#allocation11 + $0x18] sm:$0xff]
    %v79 = vld [vmem:[#allocation11 + $0x20] sm:$0xff]
    %v80 = vld [vmem:[#allocation11 + $0x28] sm:$0xff]
    %s81 = sld [smem:[#allocation3]]
    %v82 = vstv %s81
    %v83 = vmul.f32 %v75, %v82
    %s84 = sld [smem:[#allocation8]]
    %v85 = vstv %s84
    %v86 = vadd.f32 %v83, %v85
    %s87 = sld [smem:[#allocation3 + $0x1]]
    %v88 = vstv %s87
    %v89 = vmul.f32 %v76, %v88
    %v90 = vadd.f32 %v86, %v89
    %s91 = sld [smem:[#allocation3 + $0x2]]
    %v92 = vstv %s91
    %v93 = vmul.f32 %v77, %v92
    %v94 = vadd.f32 %v90, %v93
    %s95 = sld [smem:[#allocation3 + $0x3]]
    %v96 = vstv %s95
    %v97 = vmul.f32 %v78, %v96
    %v98 = vadd.f32 %v94, %v97
    %s99 = sld [smem:[#allocation3 + $0x4]]
    %v100 = vstv %s99
    %v101 = vmul.f32 %v79, %v100
    %v102 = vadd.f32 %v98, %v101
    %s103 = sld [smem:[#allocation3 + $0x5]]
    %v104 = vstv %s103
    %v105 = vmul.f32 %v80, %v104
    %v106 = vadd.f32 %v102, %v105
    %v107 = vxor.u32 %v106, 2147483648
    %v108 = vmul.f32 %v107, 1.442695
    %v109 = vpow.pop %v108
    %v110 = vadd.f32 %v109, 1.0
    %v111 = vrcp.pop %v110
    %v112 = vmul.f32 %v110, %v111
    %v113 = vsub.f32 1.0, %v112
    %v114 = vmul.f32 %v111, %v113
    %v115 = vadd.f32 %v111, %v114
    %vm116 = vweird.f32 %v110
    %vm117 = vweird.f32 %v111
    %vm118 = vmor %vm116, %vm117
    %v119 = vsel %vm118, %v111, %v115
    %v120 = vand.u32 2147483647, %v110
    %vm121 = vcmp.eq.f32.partialorder %v120, 8.507059e+37
    %v122 = vand.u32 %v110, 2147483648
    %v123 = vor.u32 1.1754944e-38, %v122
    %v124 = vsel %vm121, %v123, %v119
    %v125 = vmul.f32 1.0, %v124
    %s126 = sld [smem:[#allocation9]]
    %v127 = vstv %s126
    %v128 = vmul.f32 %v125, %v127
    %s129 = sld [smem:[#allocation2]]
    %v130 = vstv %s129
    %v131 = vadd.f32 %v128, %v130
    %s132 = sld [smem:[#allocation3 + $0x80]]
    %v133 = vstv %s132
    %v134 = vmul.f32 %v75, %v133
    %s135 = sld [smem:[#allocation8 + $0x1]]
    %v136 = vstv %s135
    %v137 = vadd.f32 %v134, %v136
    %s138 = sld [smem:[#allocation3 + $0x81]]
    %v139 = vstv %s138
    %v140 = vmul.f32 %v76, %v139
    %v141 = vadd.f32 %v137, %v140
    %s142 = sld [smem:[#allocation3 + $0x82]]
    %v143 = vstv %s142
    %v144 = vmul.f32 %v77, %v143
    %v145 = vadd.f32 %v141, %v144
    %s146 = sld [smem:[#allocation3 + $0x83]]
    %v147 = vstv %s146
    %v148 = vmul.f32 %v78, %v147
    %v149 = vadd.f32 %v145, %v148
    %s150 = sld [smem:[#allocation3 + $0x84]]
    %v151 = vstv %s150
    %v152 = vmul.f32 %v79, %v151
    %v153 = vadd.f32 %v149, %v152
    %s154 = sld [smem:[#allocation3 + $0x85]]
    %v155 = vstv %s154
    %v156 = vmul.f32 %v80, %v155
    %v157 = vadd.f32 %v153, %v156
    %v158 = vxor.u32 %v157, 2147483648
    %v159 = vmul.f32 %v158, 1.442695
    %v160 = vpow.pop %v159
    %v161 = vadd.f32 %v160, 1.0
    %v162 = vrcp.pop %v161
    %v163 = vmul.f32 %v161, %v162
    %v164 = vsub.f32 1.0, %v163
    %v165 = vmul.f32 %v162, %v164
    %v166 = vadd.f32 %v162, %v165
    %vm167 = vweird.f32 %v161
    %vm168 = vweird.f32 %v162
    %vm169 = vmor %vm167, %vm168
    %v170 = vsel %vm169, %v162, %v166
    %v171 = vand.u32 2147483647, %v161
    %vm172 = vcmp.eq.f32.partialorder %v171, 8.507059e+37
    %v173 = vand.u32 %v161, 2147483648
    %v174 = vor.u32 1.1754944e-38, %v173
    %v175 = vsel %vm172, %v174, %v170
    %v176 = vmul.f32 1.0, %v175
    %s177 = sld [smem:[#allocation9 + $0x1]]
    %v178 = vstv %s177
    %v179 = vmul.f32 %v176, %v178
    %v180 = vadd.f32 %v131, %v179
    %s181 = sld [smem:[#allocation3 + $0x100]]
    %v182 = vstv %s181
    %v183 = vmul.f32 %v75, %v182
    %s184 = sld [smem:[#allocation8 + $0x2]]
    %v185 = vstv %s184
    %v186 = vadd.f32 %v183, %v185
    %s187 = sld [smem:[#allocation3 + $0x101]]
    %v188 = vstv %s187
    %v189 = vmul.f32 %v76, %v188
    %v190 = vadd.f32 %v186, %v189
    %s191 = sld [smem:[#allocation3 + $0x102]]
    %v192 = vstv %s191
    %v193 = vmul.f32 %v77, %v192
    %v194 = vadd.f32 %v190, %v193
    %s195 = sld [smem:[#allocation3 + $0x103]]
    %v196 = vstv %s195
    %v197 = vmul.f32 %v78, %v196
    %v198 = vadd.f32 %v194, %v197
    %s199 = sld [smem:[#allocation3 + $0x104]]
    %v200 = vstv %s199
    %v201 = vmul.f32 %v79, %v200
    %v202 = vadd.f32 %v198, %v201
    %s203 = sld [smem:[#allocation3 + $0x105]]
    %v204 = vstv %s203
    %v205 = vmul.f32 %v80, %v204
    %v206 = vadd.f32 %v202, %v205
    %v207 = vxor.u32 %v206, 2147483648
    %v208 = vmul.f32 %v207, 1.442695
    %v209 = vpow.pop %v208
    %v210 = vadd.f32 %v209, 1.0
    %v211 = vrcp.pop %v210
    %v212 = vmul.f32 %v210, %v211
    %v213 = vsub.f32 1.0, %v212
    %v214 = vmul.f32 %v211, %v213
    %v215 = vadd.f32 %v211, %v214
    %vm216 = vweird.f32 %v210
    %vm217 = vweird.f32 %v211
    %vm218 = vmor %vm216, %vm217
    %v219 = vsel %vm218, %v211, %v215
    %v220 = vand.u32 2147483647, %v210
    %vm221 = vcmp.eq.f32.partialorder %v220, 8.507059e+37
    %v222 = vand.u32 %v210, 2147483648
    %v223 = vor.u32 1.1754944e-38, %v222
    %v224 = vsel %vm221, %v223, %v219
    %v225 = vmul.f32 1.0, %v224
    %s226 = sld [smem:[#allocation9 + $0x2]]
    %v227 = vstv %s226
    %v228 = vmul.f32 %v225, %v227
    %v229 = vadd.f32 %v180, %v228
    %s230 = sld [smem:[#allocation3 + $0x180]]
    %v231 = vstv %s230
    %v232 = vmul.f32 %v75, %v231
    %s233 = sld [smem:[#allocation8 + $0x3]]
    %v234 = vstv %s233
    %v235 = vadd.f32 %v232, %v234
    %s236 = sld [smem:[#allocation3 + $0x181]]
    %v237 = vstv %s236
    %v238 = vmul.f32 %v76, %v237
    %v239 = vadd.f32 %v235, %v238
    %s240 = sld [smem:[#allocation3 + $0x182]]
    %v241 = vstv %s240
    %v242 = vmul.f32 %v77, %v241
    %v243 = vadd.f32 %v239, %v242
    %s244 = sld [smem:[#allocation3 + $0x183]]
    %v245 = vstv %s244
    %v246 = vmul.f32 %v78, %v245
    %v247 = vadd.f32 %v243, %v246
    %s248 = sld [smem:[#allocation3 + $0x184]]
    %v249 = vstv %s248
    %v250 = vmul.f32 %v79, %v249
    %v251 = vadd.f32 %v247, %v250
    %s252 = sld [smem:[#allocation3 + $0x185]]
    %v253 = vstv %s252
    %v254 = vmul.f32 %v80, %v253
    %v255 = vadd.f32 %v251, %v254
    %v256 = vxor.u32 %v255, 2147483648
    %v257 = vmul.f32 %v256, 1.442695
    %v258 = vpow.pop %v257
    %v259 = vadd.f32 %v258, 1.0
    %v260 = vrcp.pop %v259
    %v261 = vmul.f32 %v259, %v260
    %v262 = vsub.f32 1.0, %v261
    %v263 = vmul.f32 %v260, %v262
    %v264 = vadd.f32 %v260, %v263
    %vm265 = vweird.f32 %v259
    %vm266 = vweird.f32 %v260
    %vm267 = vmor %vm265, %vm266
    %v268 = vsel %vm267, %v260, %v264
    %v269 = vand.u32 2147483647, %v259
    %vm270 = vcmp.eq.f32.partialorder %v269, 8.507059e+37
    %v271 = vand.u32 %v259, 2147483648
    %v272 = vor.u32 1.1754944e-38, %v271
    %v273 = vsel %vm270, %v272, %v268
    %v274 = vmul.f32 1.0, %v273
    %s275 = sld [smem:[#allocation9 + $0x3]]
    %v276 = vstv %s275
    %v277 = vmul.f32 %v274, %v276
    %v278 = vadd.f32 %v229, %v277
    %v279 = vxor.u32 %v278, 2147483648
    %v280 = vmul.f32 %v279, 1.442695
    %v281 = vpow.pop %v280
    %v282 = vadd.f32 %v281, 1.0
    %v283 = vrcp.pop %v282
    %v284 = vmul.f32 %v282, %v283
    %v285 = vsub.f32 1.0, %v284
    %v286 = vmul.f32 %v283, %v285
    %v287 = vadd.f32 %v283, %v286
    %vm288 = vweird.f32 %v282
    %vm289 = vweird.f32 %v283
    %vm290 = vmor %vm288, %vm289
    %v291 = vsel %vm290, %v283, %v287
    %v292 = vand.u32 2147483647, %v282
    %vm293 = vcmp.eq.f32.partialorder %v292, 8.507059e+37
    %v294 = vand.u32 %v282, 2147483648
    %v295 = vor.u32 1.1754944e-38, %v294
    %v296 = vsel %vm293, %v295, %v291
    %v297 = vmul.f32 1.0, %v296
    %298 = vst [vmem:[#allocation12] sm:$0xff] %v297
    // Predicated region
    $region38: #{tpu_custom_call.1} parent=1 // pred_check
      _
    $region39: #{tpu_custom_call.1} parent=1 // pred_check_branch
      %300 = sbr.rel (0) target = $region41
    $region40: #{tpu_custom_call.1} parent=1 // pred_region
      %302 = vsyncadd [#allocation5], 0
      %s304 = sshll.u32 [#allocation12], 4
      %s305 = int_to_ptr.vmem [resolvable:$true] %s304
      %s306 = sshll.u32 %s5, 4
      %s307 = int_to_ptr.hbm [resolvable:$true] %s306
      %309 = dma.vmem_to_hbm [thread:$0]  %s305, 128, %s307, [#allocation5]
    $region41: #{tpu_custom_call.1} parent=1 // pred_fallthru
      _
    // Predicated region
    $region42: #{tpu_custom_call.1} parent=1 // pred_check
      _
    $region43: #{tpu_custom_call.1} parent=1 // pred_check_branch
      %311 = sbr.rel (0) target = $region45
    $region44: #{tpu_custom_call.1} parent=1 // pred_region
      %313 = dma.done [#allocation5], 128
    $region45: #{tpu_custom_call.1} parent=1 // pred_fallthru
      _
    %314 = vsyncpa [#allocation4], 1
    %315 = vsyncpa [#allocation5], 1
    %316 = vsyncpa [#allocation6], 1
    %317 = vsyncpa [#allocation7], 1
    %318 = vsyncpa [#allocation10], 1

</llo_original>
